<compile_context>
chip_gen: v7x
topology: tpu7x:2x2x1
jax: 0.10.0
libtpu: 0.0.40
codegen_flags: <defaults>
</compile_context>

<pallas_src>
import math
from functools import partial

import jax
import jax.numpy as jnp
from jax.experimental import pallas as pl
from jax.experimental.pallas import tpu as pltpu

LN_EPS = 1e-12  # matches nn.LayerNorm(output_feat_size, eps=1e-12)


# ------------------------------ Pallas kernel --------------------------------
def _fc_ln_kernel(x_ref, w_ref, b_ref, g_ref, beta_ref, o_ref, *, eps, do_ln):
    """out = LayerNorm(x @ W + b) (LN optional).  Dropout is eval-mode identity."""
    x = x_ref[...].astype(jnp.float32)
    w = w_ref[...].astype(jnp.float32)
    y = jnp.dot(x, w, preferred_element_type=jnp.float32) + b_ref[...]
    if do_ln:
        mu = jnp.mean(y, axis=-1, keepdims=True)
        var = jnp.mean((y - mu) ** 2, axis=-1, keepdims=True)
        y = (y - mu) * jax.lax.rsqrt(var + eps)
        y = y * g_ref[...] + beta_ref[...]
    o_ref[...] = y.astype(o_ref.dtype)
    # TODO(synk): nn.Dropout is a training-time stochastic op; in eval mode it is the
    # identity, which is what is implemented here.


# ------------------------------ wrapper ---------------------------------------
def _round_up(n, m):
    return ((n + m - 1) // m) * m


def feature_resizer_forward(params, encoder_features, *, do_ln=True, eps=LN_EPS):
    """FeatureResizer.forward: fc -> (optional) LayerNorm -> dropout(identity)."""
    orig_shape = encoder_features.shape
    c1 = orig_shape[-1]
    c2 = params["w_t"].shape[-1]

    x = encoder_features.reshape(-1, c1)
    n = x.shape[0]

    # Row tile: multiple of 8 sublanes, as large as reasonable (fewer grid steps).
    tm = min(512, _round_up(n, 8))
    n_pad = _round_up(n, tm)
    if n_pad != n:
        x = jnp.pad(x, ((0, n_pad - n), (0, 0)))

    out = pl.pallas_call(
        partial(_fc_ln_kernel, eps=eps, do_ln=do_ln),
        out_shape=jax.ShapeDtypeStruct((n_pad, c2), encoder_features.dtype),
        grid=(n_pad // tm,),
        in_specs=[
            pl.BlockSpec((tm, c1), lambda i: (i, 0)),    # activations: tiled over rows
            pl.BlockSpec((c1, c2), lambda i: (0, 0)),    # weight (pre-transposed), resident
            pl.BlockSpec((1, c2), lambda i: (0, 0)),     # bias
            pl.BlockSpec((1, c2), lambda i: (0, 0)),     # LN gamma
            pl.BlockSpec((1, c2), lambda i: (0, 0)),     # LN beta
        ],
        out_specs=pl.BlockSpec((tm, c2), lambda i: (i, 0)),
        compiler_params=pltpu.CompilerParams(
            dimension_semantics=("parallel",)),
    )(x, params["w_t"], params["b"], params["gamma"], params["beta"])

    return out[:n].reshape(*orig_shape[:-1], c2)


# --------------------------- parameter construction ---------------------------
def init_params(key, input_feat_size, output_feat_size):
    """Mimics nn.Linear default init; weight is stored PRE-TRANSPOSED as (C1, C2)."""
    kw, kb = jax.random.split(key)
    bound_w = math.sqrt(1.0 / input_feat_size)  # kaiming_uniform(a=sqrt(5)) bound for Linear
    w = jax.random.uniform(kw, (output_feat_size, input_feat_size), jnp.float32,
                           -bound_w, bound_w)
    b = jax.random.uniform(kb, (1, output_feat_size), jnp.float32, -bound_w, bound_w)
    return dict(
        w_t=jnp.asarray(w.T),                                  # (C1, C2) for jnp.dot(x, w)
        b=b,
        gamma=jnp.ones((1, output_feat_size), jnp.float32),
        beta=jnp.zeros((1, output_feat_size), jnp.float32),
    )


# --------------------------- pure-JAX reference -------------------------------
def _reference(params, x, *, do_ln=True, eps=LN_EPS):
    y = x @ params["w_t"] + params["b"][0]
    if do_ln:
        mu = jnp.mean(y, axis=-1, keepdims=True)
        var = jnp.mean((y - mu) ** 2, axis=-1, keepdims=True)
        y = (y - mu) / jnp.sqrt(var + eps)
        y = y * params["gamma"][0] + params["beta"][0]
    return y  # dropout: eval identity


# ----------------------------------- main --------------------------------------
if __name__ == "__main__":
    key = jax.random.PRNGKey(0)
    k_par, k_x = jax.random.split(key)

    input_feat_size, output_feat_size = 256, 128
    batch, seq = 2, 20

    params = init_params(k_par, input_feat_size, output_feat_size)
    encoder_features = jax.random.normal(k_x, (batch, seq, input_feat_size), jnp.float32)

    out = feature_resizer_forward(params, encoder_features, do_ln=True)
    jax.block_until_ready(out)

    assert out.shape == (batch, seq, output_feat_size)
    assert bool(jnp.all(jnp.isfinite(out)))

    ref = _reference(params, encoder_features, do_ln=True)
    assert bool(jnp.allclose(out, ref, atol=1e-4, rtol=1e-4)), "mismatch vs reference"

    # Also exercise the do_ln=False path (fc + identity dropout only).
    out_no_ln = feature_resizer_forward(params, encoder_features, do_ln=False)
    jax.block_until_ready(out_no_ln)
    ref_no_ln = _reference(params, encoder_features, do_ln=False)
    assert bool(jnp.allclose(out_no_ln, ref_no_ln, atol=1e-4, rtol=1e-4))

    print("KERNEL_OK")
</pallas_src>

<mosaic_0001>
module attributes {stable_mosaic.version = 11 : i64} {
  func.func @_fc_ln_kernel(%arg0: i32, %arg1: memref<40x256xf32, #tpu.memory_space<vmem>>, %arg2: memref<256x128xf32, #tpu.memory_space<vmem>>, %arg3: memref<1x128xf32, #tpu.memory_space<vmem>>, %arg4: memref<1x128xf32, #tpu.memory_space<vmem>>, %arg5: memref<1x128xf32, #tpu.memory_space<vmem>>, %arg6: memref<40x128xf32, #tpu.memory_space<vmem>>) attributes {dimension_semantics = [#tpu.dimension_semantics<parallel>], iteration_bounds = array<i64: 1>, scalar_prefetch = 0 : i64, scratch_operands = 0 : i64, tpu.core_type = #tpu.core_type<tc>, window_params = [{transform_indices = @transform_0, window_bounds = array<i64: 40, 256>}, {pipeline_mode = #tpu.pipeline_mode<synchronous>, transform_indices = @transform_1, window_bounds = array<i64: 256, 128>}, {pipeline_mode = #tpu.pipeline_mode<synchronous>, transform_indices = @transform_2, window_bounds = array<i64: 1, 128>}, {pipeline_mode = #tpu.pipeline_mode<synchronous>, transform_indices = @transform_3, window_bounds = array<i64: 1, 128>}, {pipeline_mode = #tpu.pipeline_mode<synchronous>, transform_indices = @transform_4, window_bounds = array<i64: 1, 128>}, {transform_indices = @transform_5, window_bounds = array<i64: 40, 128>}]} {
    %c0 = arith.constant 0 : index
    %c0_0 = arith.constant 0 : index
    %0 = vector.load %arg1[%c0, %c0_0] : memref<40x256xf32, #tpu.memory_space<vmem>>, vector<40x256xf32>
    %c0_1 = arith.constant 0 : index
    %c0_2 = arith.constant 0 : index
    %1 = vector.load %arg2[%c0_1, %c0_2] : memref<256x128xf32, #tpu.memory_space<vmem>>, vector<256x128xf32>
    %cst = arith.constant dense<0.000000e+00> : vector<40x128xf32>
    %2 = tpu.matmul %0, %1, %cst {dimension_numbers = #tpu.dot_dimension_numbers<[1], [0], [0], [1], [0, 0, 1, 1], [], []>} : vector<40x256xf32>, vector<256x128xf32>, vector<40x128xf32> -> vector<40x128xf32>
    %c0_3 = arith.constant 0 : index
    %c0_4 = arith.constant 0 : index
    %3 = vector.load %arg3[%c0_3, %c0_4] : memref<1x128xf32, #tpu.memory_space<vmem>>, vector<1x128xf32>
    %4 = vector.broadcast %3 : vector<1x128xf32> to vector<40x128xf32>
    %5 = arith.addf %2, %4 : vector<40x128xf32>
    %cst_5 = arith.constant dense<0.000000e+00> : vector<40xf32>
    %6 = vector.multi_reduction <add>, %5, %cst_5 [1] : vector<40x128xf32> to vector<40xf32>
    %7 = vector.shape_cast %6 : vector<40xf32> to vector<40x1xf32>
    %cst_6 = arith.constant 1.280000e+02 : f32
    %8 = vector.broadcast %cst_6 : f32 to vector<40x1xf32>
    %9 = arith.divf %7, %8 : vector<40x1xf32>
    %10 = vector.broadcast %9 : vector<40x1xf32> to vector<40x128xf32>
    %11 = arith.subf %5, %10 : vector<40x128xf32>
    %12 = arith.mulf %11, %11 : vector<40x128xf32>
    %cst_7 = arith.constant dense<0.000000e+00> : vector<40xf32>
    %13 = vector.multi_reduction <add>, %12, %cst_7 [1] : vector<40x128xf32> to vector<40xf32>
    %14 = vector.shape_cast %13 : vector<40xf32> to vector<40x1xf32>
    %cst_8 = arith.constant 1.280000e+02 : f32
    %15 = vector.broadcast %cst_8 : f32 to vector<40x1xf32>
    %16 = arith.divf %14, %15 : vector<40x1xf32>
    %17 = vector.broadcast %9 : vector<40x1xf32> to vector<40x128xf32>
    %18 = arith.subf %5, %17 : vector<40x128xf32>
    %cst_9 = arith.constant 9.99999996E-13 : f32
    %19 = vector.broadcast %cst_9 : f32 to vector<40x1xf32>
    %20 = arith.addf %16, %19 : vector<40x1xf32>
    %21 = math.rsqrt %20 : vector<40x1xf32>
    %22 = vector.broadcast %21 : vector<40x1xf32> to vector<40x128xf32>
    %23 = arith.mulf %18, %22 : vector<40x128xf32>
    %c0_10 = arith.constant 0 : index
    %c0_11 = arith.constant 0 : index
    %24 = vector.load %arg4[%c0_10, %c0_11] : memref<1x128xf32, #tpu.memory_space<vmem>>, vector<1x128xf32>
    %25 = vector.broadcast %24 : vector<1x128xf32> to vector<40x128xf32>
    %26 = arith.mulf %23, %25 : vector<40x128xf32>
    %c0_12 = arith.constant 0 : index
    %c0_13 = arith.constant 0 : index
    %27 = vector.load %arg5[%c0_12, %c0_13] : memref<1x128xf32, #tpu.memory_space<vmem>>, vector<1x128xf32>
    %28 = vector.broadcast %27 : vector<1x128xf32> to vector<40x128xf32>
    %29 = arith.addf %26, %28 : vector<40x128xf32>
    %c0_14 = arith.constant 0 : index
    %c0_15 = arith.constant 0 : index
    %30 = vector.load %arg6[%c0_14, %c0_15] : memref<40x128xf32, #tpu.memory_space<vmem>>, vector<40x128xf32>
    tpu.vector_store %arg6[%c0_14, %c0_15], %29 {strides = array<i32>} : memref<40x128xf32, #tpu.memory_space<vmem>>, vector<40x128xf32>,
    return
  }
  func.func @transform_0(%arg0: i32) -> (i32, i32) {
    %c0_i32 = arith.constant 0 : i32
    %c0_i32_0 = arith.constant 0 : i32
    return %arg0, %c0_i32 : i32, i32
  }
  func.func @transform_1(%arg0: i32) -> (i32, i32) {
    %c0_i32 = arith.constant 0 : i32
    %c0_i32_0 = arith.constant 0 : i32
    %c0_i32_1 = arith.constant 0 : i32
    return %c0_i32, %c0_i32_0 : i32, i32
  }
  func.func @transform_2(%arg0: i32) -> (i32, i32) {
    %c0_i32 = arith.constant 0 : i32
    %c0_i32_0 = arith.constant 0 : i32
    %c0_i32_1 = arith.constant 0 : i32
    return %c0_i32, %c0_i32_0 : i32, i32
  }
  func.func @transform_3(%arg0: i32) -> (i32, i32) {
    %c0_i32 = arith.constant 0 : i32
    %c0_i32_0 = arith.constant 0 : i32
    %c0_i32_1 = arith.constant 0 : i32
    return %c0_i32, %c0_i32_0 : i32, i32
  }
  func.func @transform_4(%arg0: i32) -> (i32, i32) {
    %c0_i32 = arith.constant 0 : i32
    %c0_i32_0 = arith.constant 0 : i32
    %c0_i32_1 = arith.constant 0 : i32
    return %c0_i32, %c0_i32_0 : i32, i32
  }
  func.func @transform_5(%arg0: i32) -> (i32, i32) {
    %c0_i32 = arith.constant 0 : i32
    %c0_i32_0 = arith.constant 0 : i32
    return %arg0, %c0_i32 : i32, i32
  }
}

</mosaic_0001>

<llo_original>
// kernel: tpu_custom_call.1
$region0: #{tpu_custom_call.1}
  #allocation0 [shape = 'u32[]', space=smem, size = 0x4, offset = 0x4, fixed_abs, tag = 'smem constant byte address 0x4 - core index']
  #allocation1 [shape = 'u32[144,128]{1,0:T(1,128)}', space=vmem, size = 0x12000, scoped, tag = 'internal scratch']
  %s0 = inlined_call_operand.hbm [shape: f32[40,256], index: 0, kind: input, shape index: {}]
  %s1 = inlined_call_operand.hbm [shape: f32[256,128], index: 1, kind: input, shape index: {}]
  %s2 = inlined_call_operand.vmem [shape: f32[1,128], index: 2, kind: input, shape index: {}]
  %s3 = inlined_call_operand.vmem [shape: f32[1,128], index: 3, kind: input, shape index: {}]
  %s4 = inlined_call_operand.vmem [shape: f32[1,128], index: 4, kind: input, shape index: {}]
  %s5 = inlined_call_operand.hbm [shape: f32[40,128], index: 5, kind: output, shape index: {}]
  %s6 = sld [smem:[#allocation0]]
  $region38: #{tpu_custom_call.1} parent=0
    _
  %s8 = ssub.s32 1, %s6
  %s9 = scalar_select 0, %s8, %s6
  $region1: #{tpu_custom_call.1} parent=0
    #allocation2 [shape = 'u8[40960]{0}', space=vmem, size = 0xa000, scoped, tag = 'input window, operand 0, single buffered']
    #allocation3 [shape = 's32[1]{0}', space=sflag, size = 0x4, scoped, tag = 'scoped memory for tpu_custom_call.1']
    #allocation4 [shape = 's32[1]{0}', space=sflag, size = 0x4, scoped, tag = 'scoped memory for tpu_custom_call.1']
    #allocation5 [shape = 'u8[131072]{0}', space=vmem, size = 0x20000, scoped, tag = 'input window, operand 1, single buffered']
    #allocation6 [shape = 's32[1]{0}', space=sflag, size = 0x4, scoped, tag = 'scoped memory for tpu_custom_call.1']
    #allocation7 [shape = 'u8[20480]{0}', space=vmem, size = 0x5000, scoped, tag = 'output window, operand 0, single buffered']
    %10 = vsyncpa [#allocation3], 0
    %11 = vsyncpa [#allocation6], 0
    %12 = vsyncpa [#allocation4], 0
    // Predicated region
    $region2: #{tpu_custom_call.1} parent=1 // pred_check
      _
    $region3: #{tpu_custom_call.1} parent=1 // pred_check_branch
      %14 = sbr.rel (0) target = $region5
    $region4: #{tpu_custom_call.1} parent=1 // pred_region
      %s16 = ssub.s32 1280, 1280
      %17 = vsyncadd [#allocation3], %s16
      %s18 = sshll.u32 [#allocation2], 4
      %s19 = int_to_ptr.vmem [resolvable:$true] %s18
      %24 = dma.hbm_to_vmem [thread:$0]  %s0, 1280, %s19, [#allocation3], 256, 256, 16
    $region5: #{tpu_custom_call.1} parent=1 // pred_fallthru
      _
    // Predicated region
    $region6: #{tpu_custom_call.1} parent=1 // pred_check
      _
    $region7: #{tpu_custom_call.1} parent=1 // pred_check_branch
      %26 = sbr.rel (0) target = $region9
    $region8: #{tpu_custom_call.1} parent=1 // pred_region
      %s28 = ssub.s32 4096, 4096
      %29 = vsyncadd [#allocation6], %s28
      %s30 = sshll.u32 [#allocation5], 4
      %s31 = int_to_ptr.vmem [resolvable:$true] %s30
      %36 = dma.hbm_to_vmem [thread:$0]  %s1, 4096, %s31, [#allocation6], 128, 128, 8
    $region9: #{tpu_custom_call.1} parent=1 // pred_fallthru
      _
    // Predicated region
    $region10: #{tpu_custom_call.1} parent=1 // pred_check
      _
    $region11: #{tpu_custom_call.1} parent=1 // pred_check_branch
      %38 = sbr.rel (0) target = $region13
    $region12: #{tpu_custom_call.1} parent=1 // pred_region
      _
    $region13: #{tpu_custom_call.1} parent=1 // pred_fallthru
      _
    // Predicated region
    $region14: #{tpu_custom_call.1} parent=1 // pred_check
      _
    $region15: #{tpu_custom_call.1} parent=1 // pred_check_branch
      %40 = sbr.rel (0) target = $region17
    $region16: #{tpu_custom_call.1} parent=1 // pred_region
      _
    $region17: #{tpu_custom_call.1} parent=1 // pred_fallthru
      _
    // Predicated region
    $region18: #{tpu_custom_call.1} parent=1 // pred_check
      _
    $region19: #{tpu_custom_call.1} parent=1 // pred_check_branch
      %42 = sbr.rel (0) target = $region21
    $region20: #{tpu_custom_call.1} parent=1 // pred_region
      _
    $region21: #{tpu_custom_call.1} parent=1 // pred_fallthru
      _
    // Predicated region
    $region22: #{tpu_custom_call.1} parent=1 // pred_check
      _
    $region23: #{tpu_custom_call.1} parent=1 // pred_check_branch
      %44 = sbr.rel (0) target = $region25
    $region24: #{tpu_custom_call.1} parent=1 // pred_region
      %45 = dma.done [#allocation3], 1280
    $region25: #{tpu_custom_call.1} parent=1 // pred_fallthru
      _
    // Predicated region
    $region26: #{tpu_custom_call.1} parent=1 // pred_check
      _
    $region27: #{tpu_custom_call.1} parent=1 // pred_check_branch
      %47 = sbr.rel (0) target = $region29
    $region28: #{tpu_custom_call.1} parent=1 // pred_region
      %48 = dma.done [#allocation6], 4096
    $region29: #{tpu_custom_call.1} parent=1 // pred_fallthru
      _
    %v49 = vld [vmem:[#allocation2] sm:$0xff]
    %v50 = vld [vmem:[#allocation2 + $0x8] sm:$0xff]
    %v51 = vld [vmem:[#allocation2 + $0x10] sm:$0xff]
    %v52 = vld [vmem:[#allocation2 + $0x18] sm:$0xff]
    %v53 = vld [vmem:[#allocation2 + $0x20] sm:$0xff]
    %v54 = vld [vmem:[#allocation2 + $0x28] sm:$0xff]
    %v55 = vld [vmem:[#allocation2 + $0x30] sm:$0xff]
    %v56 = vld [vmem:[#allocation2 + $0x38] sm:$0xff]
    %v57 = vld [vmem:[#allocation2 + $0x40] sm:$0xff]
    %v58 = vld [vmem:[#allocation2 + $0x48] sm:$0xff]
    %v59 = vld [vmem:[#allocation5] sm:$0xff]
    %v60 = vld [vmem:[#allocation5 + $0x8] sm:$0xff]
    %v61 = vld [vmem:[#allocation5 + $0x10] sm:$0xff]
    %v62 = vld [vmem:[#allocation5 + $0x18] sm:$0xff]
    %v63 = vld [vmem:[#allocation5 + $0x20] sm:$0xff]
    %v64 = vld [vmem:[#allocation5 + $0x28] sm:$0xff]
    %v65 = vld [vmem:[#allocation5 + $0x30] sm:$0xff]
    %v66 = vld [vmem:[#allocation5 + $0x38] sm:$0xff]
    %v67 = vld [vmem:[#allocation5 + $0x40] sm:$0xff]
    %v68 = vld [vmem:[#allocation5 + $0x48] sm:$0xff]
    %v69 = vld [vmem:[#allocation5 + $0x50] sm:$0xff]
    %v70 = vld [vmem:[#allocation5 + $0x58] sm:$0xff]
    %v71 = vld [vmem:[#allocation5 + $0x60] sm:$0xff]
    %v72 = vld [vmem:[#allocation5 + $0x68] sm:$0xff]
    %v73 = vld [vmem:[#allocation5 + $0x70] sm:$0xff]
    %v74 = vld [vmem:[#allocation5 + $0x78] sm:$0xff]
    %v75 = vld [vmem:[#allocation5 + $0x80] sm:$0xff]
    %v76 = vld [vmem:[#allocation5 + $0x88] sm:$0xff]
    %v77 = vld [vmem:[#allocation5 + $0x90] sm:$0xff]
    %v78 = vld [vmem:[#allocation5 + $0x98] sm:$0xff]
    %v79 = vld [vmem:[#allocation5 + $0xa0] sm:$0xff]
    %v80 = vld [vmem:[#allocation5 + $0xa8] sm:$0xff]
    %v81 = vld [vmem:[#allocation5 + $0xb0] sm:$0xff]
    %v82 = vld [vmem:[#allocation5 + $0xb8] sm:$0xff]
    %v83 = vld [vmem:[#allocation5 + $0xc0] sm:$0xff]
    %v84 = vld [vmem:[#allocation5 + $0xc8] sm:$0xff]
    %v85 = vld [vmem:[#allocation5 + $0xd0] sm:$0xff]
    %v86 = vld [vmem:[#allocation5 + $0xd8] sm:$0xff]
    %v87 = vld [vmem:[#allocation5 + $0xe0] sm:$0xff]
    %v88 = vld [vmem:[#allocation5 + $0xe8] sm:$0xff]
    %v89 = vld [vmem:[#allocation5 + $0xf0] sm:$0xff]
    %v90 = vld [vmem:[#allocation5 + $0xf8] sm:$0xff]
    %v91 = vld [vmem:[%s2] sm:$0x1]
    %v93 = vlaneseq
    %v94 = vshrl.u32 %v93, 7
    %v95 = vsub.s32 0, %v94
    %v96 = vrot.slane %v91, %v95
    %98 = vmatprep.subr.mxu0 0.0
    %99 = vmatpush1.msra.mxu0 %v59
    %100 = vmatprep.subr.mxu0 0.0
    %101 = vmatpush1.msra.mxu0 %v60
    %102 = vmatprep.subr.mxu0 0.0
    %103 = vmatpush1.msra.mxu0 %v61
    %104 = vmatprep.subr.mxu0 0.0
    %105 = vmatpush1.msra.mxu0 %v62
    %106 = vmatprep.subr.mxu0 0.0
    %107 = vmatpush1.msra.mxu0 %v63
    %108 = vmatprep.subr.mxu0 0.0
    %109 = vmatpush1.msra.mxu0 %v64
    %110 = vmatprep.subr.mxu0 0.0
    %111 = vmatpush1.msra.mxu0 %v65
    %112 = vmatprep.subr.mxu0 0.0
    %113 = vmatpush1.msra.mxu0 %v66
    %114 = vmatprep.subr.mxu0 0.0
    %115 = vmatpush1.msra.mxu0 %v67
    %116 = vmatprep.subr.mxu0 0.0
    %117 = vmatpush1.msra.mxu0 %v68
    %118 = vmatprep.subr.mxu0 0.0
    %119 = vmatpush1.msra.mxu0 %v69
    %120 = vmatprep.subr.mxu0 0.0
    %121 = vmatpush1.msra.mxu0 %v70
    %122 = vmatprep.subr.mxu0 0.0
    %123 = vmatpush1.msra.mxu0 %v71
    %124 = vmatprep.subr.mxu0 0.0
    %125 = vmatpush1.msra.mxu0 %v72
    %126 = vmatprep.subr.mxu0 0.0
    %127 = vmatpush1.msra.mxu0 %v73
    %128 = vmatprep.subr.mxu0 0.0
    %129 = vmatpush1.msra.mxu0 %v74
    %130 = vmatprep.subr.mxu0 0.0
    %131 = vmatpush1.msra.mxu0 %v75
    %132 = vmatprep.subr.mxu0 0.0
    %133 = vmatpush1.msra.mxu0 %v76
    %134 = vmatprep.subr.mxu0 0.0
    %135 = vmatpush1.msra.mxu0 %v77
    %136 = vmatprep.subr.mxu0 0.0
    %137 = vmatpush1.msra.mxu0 %v78
    %138 = vmatprep.subr.mxu0 0.0
    %139 = vmatpush1.msra.mxu0 %v79
    %140 = vmatprep.subr.mxu0 0.0
    %141 = vmatpush1.msra.mxu0 %v80
    %142 = vmatprep.subr.mxu0 0.0
    %143 = vmatpush1.msra.mxu0 %v81
    %144 = vmatprep.subr.mxu0 0.0
    %145 = vmatpush1.msra.mxu0 %v82
    %146 = vmatprep.subr.mxu0 0.0
    %147 = vmatpush1.msra.mxu0 %v83
    %148 = vmatprep.subr.mxu0 0.0
    %149 = vmatpush1.msra.mxu0 %v84
    %150 = vmatprep.subr.mxu0 0.0
    %151 = vmatpush1.msra.mxu0 %v85
    %152 = vmatprep.subr.mxu0 0.0
    %153 = vmatpush1.msra.mxu0 %v86
    %154 = vmatprep.subr.mxu0 0.0
    %155 = vmatpush1.msra.mxu0 %v87
    %156 = vmatprep.subr.mxu0 0.0
    %157 = vmatpush1.msra.mxu0 %v88
    %158 = vmatprep.subr.mxu0 0.0
    %159 = vmatpush1.msra.mxu0 %v89
    %160 = vmatprep.subr.mxu0 0.0
    %161 = vmatpush1.msra.mxu0 %v90
    %162 = vmatprep.mubr.f32.mxu0 %v50
    %163 = vmatmul.mubr.f32.gmra.mrb[0].mxu0 %v49
    %v164 = vpop.f32.mrb[0].mxu0
    %v165 = vadd.f32 %v96, %v164
    %v166 = vpop.f32.mrb[0].mxu0
    %167 = vmatprep.mubr.f32.mxu0 %v52
    %168 = vmatmul.mubr.f32.gmra.mrb[0].mxu0 %v51
    %v169 = vpop.f32.mrb[0].mxu0
    %v170 = vadd.f32 %v96, %v169
    %v171 = vpop.f32.mrb[0].mxu0
    %172 = vmatprep.mubr.f32.mxu0 %v54
    %173 = vmatmul.mubr.f32.gmra.mrb[0].mxu0 %v53
    %v174 = vpop.f32.mrb[0].mxu0
    %v175 = vadd.f32 %v96, %v174
    %v176 = vpop.f32.mrb[0].mxu0
    %177 = vmatprep.mubr.f32.mxu0 %v56
    %178 = vmatmul.mubr.f32.gmra.mrb[0].mxu0 %v55
    %v179 = vpop.f32.mrb[0].mxu0
    %v180 = vadd.f32 %v96, %v179
    %v181 = vpop.f32.mrb[0].mxu0
    %182 = vmatprep.mubr.f32.mxu0 %v58
    %183 = vmatmul.mubr.f32.gmra.mrb[0].mxu0 %v57
    %v184 = vpop.f32.mrb[0].mxu0
    %v185 = vadd.f32 %v96, %v184
    %v186 = vpop.f32.mrb[0].mxu0
    %187 = vdwg.mxu0
    %188 = vadd.xlane.f32.xlu0 %v165
    %v189 = vpop.xlane.xlu0 %188
    %190 = vadd.xlane.f32.xlu0 %v170
    %v191 = vpop.xlane.xlu0 %190
    %192 = vadd.xlane.f32.xlu0 %v175
    %v193 = vpop.xlane.xlu0 %192
    %194 = vadd.xlane.f32.xlu0 %v180
    %v195 = vpop.xlane.xlu0 %194
    %196 = vadd.xlane.f32.xlu0 %v185
    %v197 = vpop.xlane.xlu0 %196
    %v198 = vrcp.pop 128.0
    %v199 = vmul.f32 %v189, %v198
    %v200 = vmul.f32 %v191, %v198
    %v201 = vmul.f32 %v193, %v198
    %v202 = vmul.f32 %v195, %v198
    %v203 = vmul.f32 %v197, %v198
    %v204 = vsub.f32 %v165, %v199
    %v205 = vsub.f32 %v170, %v200
    %v206 = vsub.f32 %v175, %v201
    %v207 = vsub.f32 %v180, %v202
    %v208 = vsub.f32 %v185, %v203
    %v209 = vmul.f32 %v204, %v204
    %v210 = vmul.f32 %v205, %v205
    %v211 = vmul.f32 %v206, %v206
    %v212 = vmul.f32 %v207, %v207
    %v213 = vmul.f32 %v208, %v208
    %214 = vadd.xlane.f32.xlu0 %v209
    %v215 = vpop.xlane.xlu0 %214
    %216 = vadd.xlane.f32.xlu0 %v210
    %v217 = vpop.xlane.xlu0 %216
    %218 = vadd.xlane.f32.xlu0 %v211
    %v219 = vpop.xlane.xlu0 %218
    %220 = vadd.xlane.f32.xlu0 %v212
    %v221 = vpop.xlane.xlu0 %220
    %222 = vadd.xlane.f32.xlu0 %v213
    %v223 = vpop.xlane.xlu0 %222
    %v224 = vmul.f32 %v215, %v198
    %v225 = vmul.f32 %v217, %v198
    %v226 = vmul.f32 %v219, %v198
    %v227 = vmul.f32 %v221, %v198
    %v228 = vmul.f32 %v223, %v198
    %v229 = vadd.f32 %v224, 1e-12
    %v230 = vadd.f32 %v225, 1e-12
    %v231 = vadd.f32 %v226, 1e-12
    %v232 = vadd.f32 %v227, 1e-12
    %v233 = vadd.f32 %v228, 1e-12
    %v234 = vrsqrt.pop %v229
    %v235 = vrsqrt.pop %v230
    %v236 = vrsqrt.pop %v231
    %v237 = vrsqrt.pop %v232
    %v238 = vrsqrt.pop %v233
    %v239 = vmul.f32 %v204, %v234
    %v240 = vmul.f32 %v205, %v235
    %v241 = vmul.f32 %v206, %v236
    %v242 = vmul.f32 %v207, %v237
    %v243 = vmul.f32 %v208, %v238
    %v244 = vld [vmem:[%s3] sm:$0x1]
    %v246 = vlaneseq
    %v247 = vshrl.u32 %v246, 7
    %v248 = vsub.s32 0, %v247
    %v249 = vrot.slane %v244, %v248
    %v251 = vmul.f32 %v239, %v249
    %v252 = vmul.f32 %v240, %v249
    %v253 = vmul.f32 %v241, %v249
    %v254 = vmul.f32 %v242, %v249
    %v255 = vmul.f32 %v243, %v249
    %v256 = vld [vmem:[%s4] sm:$0x1]
    %v258 = vlaneseq
    %v259 = vshrl.u32 %v258, 7
    %v260 = vsub.s32 0, %v259
    %v261 = vrot.slane %v256, %v260
    %v263 = vadd.f32 %v251, %v261
    %v264 = vadd.f32 %v252, %v261
    %v265 = vadd.f32 %v253, %v261
    %v266 = vadd.f32 %v254, %v261
    %v267 = vadd.f32 %v255, %v261
    %268 = vst [vmem:[#allocation7] sm:$0xff] %v263
    %269 = vst [vmem:[#allocation7 + $0x8] sm:$0xff] %v264
    %270 = vst [vmem:[#allocation7 + $0x10] sm:$0xff] %v265
    %271 = vst [vmem:[#allocation7 + $0x18] sm:$0xff] %v266
    %272 = vst [vmem:[#allocation7 + $0x20] sm:$0xff] %v267
    // Predicated region
    $region30: #{tpu_custom_call.1} parent=1 // pred_check
      _
    $region31: #{tpu_custom_call.1} parent=1 // pred_check_branch
      %274 = sbr.rel (0) target = $region33
    $region32: #{tpu_custom_call.1} parent=1 // pred_region
      %s276 = ssub.s32 640, 640
      %277 = vsyncadd [#allocation4], %s276
      %s278 = sshll.u32 [#allocation7], 4
      %s279 = int_to_ptr.vmem [resolvable:$true] %s278
      %284 = dma.vmem_to_hbm [thread:$0]  %s279, 640, %s5, [#allocation4], 128, 128, 8
    $region33: #{tpu_custom_call.1} parent=1 // pred_fallthru
      _
    // Predicated region
    $region34: #{tpu_custom_call.1} parent=1 // pred_check
      _
    $region35: #{tpu_custom_call.1} parent=1 // pred_check_branch
      %286 = sbr.rel (0) target = $region37
    $region36: #{tpu_custom_call.1} parent=1 // pred_region
      %287 = dma.done [#allocation4], 640
    $region37: #{tpu_custom_call.1} parent=1 // pred_fallthru
      _
    %288 = vsyncpa [#allocation3], 1
    %289 = vsyncpa [#allocation6], 1
    %290 = vsyncpa [#allocation4], 1

</llo_original>
